<compile_context>
chip_gen: v7x
topology: tpu7x:2x2x1
jax: 0.10.0
libtpu: 0.0.40
codegen_flags: <defaults>
</compile_context>

<pallas_src>
import jax
import jax.numpy as jnp
from jax import lax
from jax.experimental import pallas as pl
from jax.experimental.pallas import tpu as pltpu


# ---------------------------------------------------------------------------
# Chip-aware planning helpers
# ---------------------------------------------------------------------------
def _vmem_budget():
    """Return (tile_planning_budget_bytes, scoped_vmem_limit_bytes), chip-aware."""
    cap = 64 * 1024 * 1024                         # conservative fallback (v7x-sized)
    try:
        cap = int(pltpu.get_tpu_info().vmem_capacity_bytes)
    except Exception:
        pass
    limit = min(int(0.80 * cap), 100 * 1024 * 1024)   # scoped-VMEM limit we request
    budget = int(0.60 * cap)                          # what tile derivation plans against
    return budget, limit


def _balanced_tile(n, t_max):
    """Balanced row tile: T <= t_max, nt = cdiv(n, T) tiles cover n with minimal waste."""
    t = max(1, min(int(t_max), n))
    nt = pl.cdiv(n, t)
    return pl.cdiv(n, nt), nt


def _resident_spec(block_shape, index_map):
    """BlockSpec for grid-invariant operands; single-buffered when supported."""
    try:
        return pl.BlockSpec(block_shape, index_map, pipeline_mode=pl.Buffered(1))
    except Exception:                               # older jax: no pipeline_mode/Buffered
        return pl.BlockSpec(block_shape, index_map)


# ---------------------------------------------------------------------------
# use_conv=True : 3x3 / stride-2 / pad-1 convolution
# ---------------------------------------------------------------------------
def _make_conv_kernel(T, Wo, K3, N_pad, n_chunk):
    """One (batch, row-tile) grid step.

    x_ref : (1, T, 2, Wo, K3)   kx-merged, row-parity-folded input tile (bf16)
    xh_ref: (1, 1, 1, Wo, K3)   halo: parity-0 row-pair (t+1)*T (ky=2 of the last row)
    w_ref : (3, K3, N_pad)      per-ky weights, K index = kx*C + c (bf16)
    b_ref : (1, N_pad)          f32 bias
    o_ref : (1, T, Wo, N_pad)   lane-dense output block
    """

    def kernel(x_ref, xh_ref, w_ref, b_ref, o_ref):
        lhs0 = x_ref[0, :, 0]                       # padded rows 2*oy     -> (T, Wo, K3)
        lhs1 = x_ref[0, :, 1]                       # padded rows 2*oy + 1
        halo = xh_ref[0, 0]                         # (1, Wo, K3)
        if T > 1:                                   # padded rows 2*oy + 2
            lhs2 = jnp.concatenate([x_ref[0, 1:, 0], halo], axis=0)
        else:
            lhs2 = halo
        lhs = [lhs0.reshape(T * Wo, K3),
               lhs1.reshape(T * Wo, K3),
               lhs2.reshape(T * Wo, K3)]

        # Chunk the output channels so the live f32 accumulator stays small.
        for n0 in range(0, N_pad, n_chunk):
            acc = jnp.broadcast_to(b_ref[:, n0:n0 + n_chunk], (T * Wo, n_chunk))
            for ky in range(3):
                acc = acc + jnp.dot(lhs[ky], w_ref[ky, :, n0:n0 + n_chunk],
                                    preferred_element_type=jnp.float32)
            o_ref[:, :, :, n0:n0 + n_chunk] = (
                acc.reshape(1, T, Wo, n_chunk).astype(o_ref.dtype))

    return kernel


def downsample_conv(x_nchw, weight, bias, *, compute_dtype=jnp.bfloat16,
                    max_row_tile=256):
    """nn.Conv2d(C, C_out, 3, stride=2, padding=1) forward (NCHW in/out)."""
    B, C, H, W = x_nchw.shape
    C_out = weight.shape[0]
    Ho, Wo = (H + 1) // 2, (W + 1) // 2
    K3 = 3 * C
    # Lane-dense output channels; 256-granular above 128 so 256-wide MXUs see full N.
    N_pad = 128 if C_out <= 128 else pl.cdiv(C_out, 256) * 256
    n_chunk = min(N_pad, 256)

    # --- chip-aware row-tile derivation --------------------------------------
    budget, vmem_limit = _vmem_budget()
    cdt = jnp.dtype(compute_dtype).itemsize
    odt = jnp.dtype(x_nchw.dtype).itemsize
    per_row = (2 * 2 * Wo * K3 * cdt            # double-buffered input rows (2 parities)
               + 3 * Wo * K3 * cdt              # lhs slabs / concat copies
               + 2 * Wo * N_pad * odt           # double-buffered output rows
               + Wo * n_chunk * (4 + odt))      # live accumulator + store temp
    fixed = (2 * 3 * K3 * N_pad * cdt           # weights (worst case double-buffered)
             + 2 * Wo * K3 * cdt                # halo tile
             + 4 * N_pad * 4)
    T_max = max(1, (budget - fixed) // per_row)
    T, nt = _balanced_tile(Ho, min(max_row_tile, T_max))
    Ho_pad = T * nt

    # --- layout glue (JAX/XLA, ~1.5x input traffic, no 9x im2col) ------------
    # Merge the 3 kx taps onto the channel axis and fold padded-row parity into a
    # size-2 axis: every ky tap becomes a contiguous, block-aligned slab in-kernel.
    # TODO(synk): keep activations NHWC end-to-end to drop these transposes.
    x = jnp.transpose(x_nchw.astype(compute_dtype), (0, 2, 3, 1))         # NHWC bf16
    Hp, Wp = 2 * (Ho_pad + 1), 2 * Wo + 2
    xp = jnp.pad(x, ((0, 0), (1, Hp - 1 - H), (1, Wp - 1 - W), (0, 0)))
    x3 = jnp.concatenate([xp[:, :, k:k + 2 * Wo:2, :] for k in range(3)], axis=-1)
    x3 = x3.reshape(B, Ho_pad + 1, 2, Wo, K3)

    w3 = jnp.transpose(weight, (2, 3, 1, 0)).reshape(3, K3, C_out)        # (ky, kx*C+c, o)
    w3 = jnp.pad(w3, ((0, 0), (0, 0), (0, N_pad - C_out))).astype(compute_dtype)
    b3 = jnp.pad(bias, (0, N_pad - C_out)).reshape(1, N_pad).astype(jnp.float32)

    kernel = _make_conv_kernel(T, Wo, K3, N_pad, n_chunk)
    cost = pl.CostEstimate(
        flops=int(2 * B * Ho_pad * Wo * 3 * K3 * N_pad),
        transcendentals=0,
        bytes_accessed=int(B * (2 * Ho_pad + 1) * Wo * K3 * cdt
                           + 3 * K3 * N_pad * cdt
                           + B * Ho_pad * Wo * N_pad * odt))

    out = pl.pallas_call(
        kernel,
        out_shape=jax.ShapeDtypeStruct((B, Ho_pad, Wo, N_pad), x_nchw.dtype),
        grid_spec=pltpu.PrefetchScalarGridSpec(
            num_scalar_prefetch=0,
            grid=(B, nt),
            in_specs=[
                pl.BlockSpec((1, T, 2, Wo, K3), lambda b, t: (b, t, 0, 0, 0)),
                pl.BlockSpec((1, 1, 1, Wo, K3),
                             lambda b, t: (b, (t + 1) * T, 0, 0, 0)),     # halo row-pair
                _resident_spec((3, K3, N_pad), lambda b, t: (0, 0, 0)),
                _resident_spec((1, N_pad), lambda b, t: (0, 0)),
            ],
            out_specs=pl.BlockSpec((1, T, Wo, N_pad), lambda b, t: (b, t, 0, 0))),
        compiler_params=pltpu.CompilerParams(
            dimension_semantics=("parallel", "parallel"),
            vmem_limit_bytes=vmem_limit),
        cost_estimate=cost,
    )(x3, x3, w3, b3)

    out = out[:, :Ho, :, :C_out]                     # drop row/lane padding
    return jnp.transpose(out, (0, 3, 1, 2))          # back to NCHW


# ---------------------------------------------------------------------------
# use_conv=False : 2x2 / stride-2 average pool
# ---------------------------------------------------------------------------
def _make_avgpool_kernel(C):
    def kernel(x_ref, o_ref):
        x = x_ref[0].astype(jnp.float32)             # (T, 2, Wo, 2*C)
        s = (x[:, 0, :, :C] + x[:, 0, :, C:]
             + x[:, 1, :, :C] + x[:, 1, :, C:])
        o_ref[0] = (s * 0.25).astype(o_ref.dtype)
    return kernel


def downsample_avgpool(x_nchw, *, max_row_tile=512):
    """nn.AvgPool2d(kernel_size=2, stride=2) forward (NCHW in/out)."""
    B, C, H, W = x_nchw.shape
    Ho, Wo = H // 2, W // 2                          # AvgPool2d floors odd dims

    budget, vmem_limit = _vmem_budget()
    it = jnp.dtype(x_nchw.dtype).itemsize
    per_row = (2 * 2 * Wo * 2 * C * it               # double-buffered input rows
               + 2 * Wo * C * it                     # double-buffered output rows
               + Wo * 2 * C * 4 + Wo * C * 4)        # f32 temporaries
    T_max = max(1, (budget // 2) // per_row)         # HBM-bound: half the budget is plenty
    T, nt = _balanced_tile(Ho, min(max_row_tile, T_max))

    # TODO(synk): NCHW-native variant (W on lanes, pltpu.roll pair-sum) would drop the
    # transposes; kept NHWC so channels stay on the 128-lane axis (lane-dense for C>=128).
    x = jnp.transpose(x_nchw[:, :, :2 * Ho, :2 * Wo], (0, 2, 3, 1))       # NHWC
    xr = x.reshape(B, Ho, 2, Wo, 2 * C)              # fold 2x2 window into (2, 2C)

    cost = pl.CostEstimate(flops=int(4 * B * Ho * Wo * C), transcendentals=0,
                           bytes_accessed=int(5 * B * Ho * Wo * C * it))
    out = pl.pallas_call(
        _make_avgpool_kernel(C),
        out_shape=jax.ShapeDtypeStruct((B, Ho, Wo, C), x_nchw.dtype),
        grid_spec=pltpu.PrefetchScalarGridSpec(
            num_scalar_prefetch=0,
            grid=(B, nt),
            in_specs=[pl.BlockSpec((1, T, 2, Wo, 2 * C),
                                   lambda b, t: (b, t, 0, 0, 0))],
            out_specs=pl.BlockSpec((1, T, Wo, C), lambda b, t: (b, t, 0, 0))),
        compiler_params=pltpu.CompilerParams(
            dimension_semantics=("parallel", "parallel"),
            vmem_limit_bytes=vmem_limit),
        cost_estimate=cost,
    )(xr)
    return jnp.transpose(out, (0, 3, 1, 2))          # back to NCHW


# ---------------------------------------------------------------------------
# References (pure JAX) for verification
# ---------------------------------------------------------------------------
def _conv_ref(x_nchw, weight, bias, compute_dtype=jnp.float32):
    xc = x_nchw.astype(compute_dtype).astype(jnp.float32)
    wc = weight.astype(compute_dtype).astype(jnp.float32)
    y = lax.conv_general_dilated(
        xc, wc, window_strides=(2, 2), padding=((1, 1), (1, 1)),
        dimension_numbers=("NCHW", "OIHW", "NCHW"),
        precision=lax.Precision.HIGHEST)
    return y + bias.reshape(1, -1, 1, 1)


def _avgpool_ref(x_nchw):
    B, C, H, W = x_nchw.shape
    Ho, Wo = H // 2, W // 2
    xc = x_nchw[:, :, :2 * Ho, :2 * Wo]
    return xc.reshape(B, C, Ho, 2, Wo, 2).mean(axis=(3, 5))


# ---------------------------------------------------------------------------
if __name__ == "__main__":
    key = jax.random.PRNGKey(0)
    k_x, k_w, k_b, k_x2, k_x3 = jax.random.split(key, 5)

    # --- use_conv=True : channels=4 -> out_channels=8, spatial 16x16 --------
    B, C, H, W = 2, 4, 16, 16
    C_out = 8
    x = jax.random.normal(k_x, (B, C, H, W), dtype=jnp.float32)
    fan_in = C * 3 * 3
    bound = 1.0 / (fan_in ** 0.5)
    weight = jax.random.uniform(k_w, (C_out, C, 3, 3), jnp.float32, -bound, bound)
    bias = jax.random.uniform(k_b, (C_out,), jnp.float32, -bound, bound)

    y_conv = jax.block_until_ready(downsample_conv(x, weight, bias))
    assert y_conv.shape == (B, C_out, H // 2, W // 2)
    # Tight check vs a reference built from identically bf16-rounded operands
    # (kernel accumulates in f32), plus a loose sanity check vs full f32.
    assert jnp.allclose(y_conv, _conv_ref(x, weight, bias, jnp.bfloat16),
                        atol=1e-3, rtol=1e-3), "conv (bf16 operands) mismatch"
    assert jnp.allclose(y_conv, _conv_ref(x, weight, bias),
                        atol=5e-2, rtol=5e-2), "conv vs f32 reference mismatch"

    # --- use_conv=False : channels == out_channels, 2x2 avg pool ------------
    x2 = jax.random.normal(k_x2, (B, C, H, W), dtype=jnp.float32)
    y_pool = jax.block_until_ready(downsample_avgpool(x2))
    assert y_pool.shape == (B, C, H // 2, W // 2)
    assert jnp.allclose(y_pool, _avgpool_ref(x2), atol=1e-5, rtol=1e-5), "avgpool mismatch"

    # --- odd spatial dims (PyTorch floor semantics) --------------------------
    x3 = jax.random.normal(k_x3, (B, C, 15, 15), dtype=jnp.float32)
    y3 = jax.block_until_ready(downsample_conv(x3, weight, bias))
    assert y3.shape == (B, C_out, 8, 8)
    assert jnp.allclose(y3, _conv_ref(x3, weight, bias, jnp.bfloat16),
                        atol=1e-3, rtol=1e-3), "odd-dim conv mismatch"
    y4 = jax.block_until_ready(downsample_avgpool(x3))
    assert y4.shape == (B, C, 7, 7)
    assert jnp.allclose(y4, _avgpool_ref(x3), atol=1e-5, rtol=1e-5), "odd-dim avgpool mismatch"

    print("KERNEL_OK")
</pallas_src>

<mosaic_0001>
module attributes {stable_mosaic.version = 11 : i64} {
  func.func @kernel(%arg0: i32, %arg1: i32, %arg2: memref<1x8x2x8x12xbf16, #tpu.memory_space<vmem>>, %arg3: memref<1x1x1x8x12xbf16, #tpu.memory_space<vmem>>, %arg4: memref<3x12x128xbf16, #tpu.memory_space<vmem>>, %arg5: memref<1x128xf32, #tpu.memory_space<vmem>>, %arg6: memref<1x8x8x128xf32, #tpu.memory_space<vmem>>) attributes {dimension_semantics = [#tpu.dimension_semantics<parallel>, #tpu.dimension_semantics<parallel>], iteration_bounds = array<i64: 2, 1>, scalar_prefetch = 0 : i64, scratch_operands = 0 : i64, tpu.core_type = #tpu.core_type<tc>, window_params = [{transform_indices = @transform_0, window_bounds = array<i64: 1, 8, 2, 8, 12>}, {transform_indices = @transform_1, window_bounds = array<i64: 1, 1, 1, 8, 12>}, {pipeline_mode = #tpu.pipeline_mode<synchronous>, transform_indices = @transform_2, window_bounds = array<i64: 3, 12, 128>}, {pipeline_mode = #tpu.pipeline_mode<synchronous>, transform_indices = @transform_3, window_bounds = array<i64: 1, 128>}, {transform_indices = @transform_4, window_bounds = array<i64: 1, 8, 8, 128>}]} {
    %c0 = arith.constant 0 : index
    %c0_0 = arith.constant 0 : index
    %c0_1 = arith.constant 0 : index
    %c0_2 = arith.constant 0 : index
    %c0_3 = arith.constant 0 : index
    %0 = vector.load %arg2[%c0, %c0_0, %c0_1, %c0_2, %c0_3] : memref<1x8x2x8x12xbf16, #tpu.memory_space<vmem>>, vector<1x8x1x8x12xbf16>
    %1 = vector.shape_cast %0 : vector<1x8x1x8x12xbf16> to vector<8x8x12xbf16>
    %c0_4 = arith.constant 0 : index
    %c0_5 = arith.constant 0 : index
    %c1 = arith.constant 1 : index
    %c0_6 = arith.constant 0 : index
    %c0_7 = arith.constant 0 : index
    %2 = vector.load %arg2[%c0_4, %c0_5, %c1, %c0_6, %c0_7] : memref<1x8x2x8x12xbf16, #tpu.memory_space<vmem>>, vector<1x8x1x8x12xbf16>
    %3 = vector.shape_cast %2 : vector<1x8x1x8x12xbf16> to vector<8x8x12xbf16>
    %c0_8 = arith.constant 0 : index
    %c0_9 = arith.constant 0 : index
    %c0_10 = arith.constant 0 : index
    %c0_11 = arith.constant 0 : index
    %c0_12 = arith.constant 0 : index
    %4 = vector.load %arg3[%c0_8, %c0_9, %c0_10, %c0_11, %c0_12] : memref<1x1x1x8x12xbf16, #tpu.memory_space<vmem>>, vector<1x1x1x8x12xbf16>
    %5 = vector.shape_cast %4 : vector<1x1x1x8x12xbf16> to vector<1x8x12xbf16>
    %c0_13 = arith.constant 0 : index
    %c1_14 = arith.constant 1 : index
    %c0_15 = arith.constant 0 : index
    %c0_16 = arith.constant 0 : index
    %c0_17 = arith.constant 0 : index
    %6 = vector.load %arg2[%c0_13, %c1_14, %c0_15, %c0_16, %c0_17] : memref<1x8x2x8x12xbf16, #tpu.memory_space<vmem>>, vector<1x7x1x8x12xbf16>
    %7 = vector.shape_cast %6 : vector<1x7x1x8x12xbf16> to vector<7x8x12xbf16>
    %8 = tpu.concatenate %7, %5 in 0 : vector<7x8x12xbf16>, vector<1x8x12xbf16> -> vector<8x8x12xbf16>
    %9 = vector.shape_cast %1 : vector<8x8x12xbf16> to vector<64x12xbf16>
    %10 = vector.shape_cast %3 : vector<8x8x12xbf16> to vector<64x12xbf16>
    %11 = vector.shape_cast %8 : vector<8x8x12xbf16> to vector<64x12xbf16>
    %c0_18 = arith.constant 0 : index
    %c0_19 = arith.constant 0 : index
    %12 = vector.load %arg5[%c0_18, %c0_19] : memref<1x128xf32, #tpu.memory_space<vmem>>, vector<1x128xf32>
    %13 = vector.shape_cast %12 : vector<1x128xf32> to vector<1x128xf32>
    %14 = vector.broadcast %13 : vector<1x128xf32> to vector<64x128xf32>
    %c0_20 = arith.constant 0 : index
    %c0_21 = arith.constant 0 : index
    %c0_22 = arith.constant 0 : index
    %15 = vector.load %arg4[%c0_20, %c0_21, %c0_22] : memref<3x12x128xbf16, #tpu.memory_space<vmem>>, vector<1x12x128xbf16>
    %16 = vector.shape_cast %15 : vector<1x12x128xbf16> to vector<12x128xbf16>
    %cst = arith.constant dense<0.000000e+00> : vector<64x128xf32>
    %17 = tpu.matmul %9, %16, %cst {dimension_numbers = #tpu.dot_dimension_numbers<[1], [0], [0], [1], [0, 0, 1, 1], [], []>} : vector<64x12xbf16>, vector<12x128xbf16>, vector<64x128xf32> -> vector<64x128xf32>
    %18 = arith.addf %14, %17 : vector<64x128xf32>
    %c1_23 = arith.constant 1 : index
    %c0_24 = arith.constant 0 : index
    %c0_25 = arith.constant 0 : index
    %19 = vector.load %arg4[%c1_23, %c0_24, %c0_25] : memref<3x12x128xbf16, #tpu.memory_space<vmem>>, vector<1x12x128xbf16>
    %20 = vector.shape_cast %19 : vector<1x12x128xbf16> to vector<12x128xbf16>
    %cst_26 = arith.constant dense<0.000000e+00> : vector<64x128xf32>
    %21 = tpu.matmul %10, %20, %cst_26 {dimension_numbers = #tpu.dot_dimension_numbers<[1], [0], [0], [1], [0, 0, 1, 1], [], []>} : vector<64x12xbf16>, vector<12x128xbf16>, vector<64x128xf32> -> vector<64x128xf32>
    %22 = arith.addf %18, %21 : vector<64x128xf32>
    %c2 = arith.constant 2 : index
    %c0_27 = arith.constant 0 : index
    %c0_28 = arith.constant 0 : index
    %23 = vector.load %arg4[%c2, %c0_27, %c0_28] : memref<3x12x128xbf16, #tpu.memory_space<vmem>>, vector<1x12x128xbf16>
    %24 = vector.shape_cast %23 : vector<1x12x128xbf16> to vector<12x128xbf16>
    %cst_29 = arith.constant dense<0.000000e+00> : vector<64x128xf32>
    %25 = tpu.matmul %11, %24, %cst_29 {dimension_numbers = #tpu.dot_dimension_numbers<[1], [0], [0], [1], [0, 0, 1, 1], [], []>} : vector<64x12xbf16>, vector<12x128xbf16>, vector<64x128xf32> -> vector<64x128xf32>
    %26 = arith.addf %22, %25 : vector<64x128xf32>
    %27 = vector.shape_cast %26 : vector<64x128xf32> to vector<1x8x8x128xf32>
    %c0_30 = arith.constant 0 : index
    %c0_31 = arith.constant 0 : index
    %c0_32 = arith.constant 0 : index
    %c0_33 = arith.constant 0 : index
    %28 = vector.load %arg6[%c0_30, %c0_31, %c0_32, %c0_33] : memref<1x8x8x128xf32, #tpu.memory_space<vmem>>, vector<1x8x8x128xf32>
    tpu.vector_store %arg6[%c0_30, %c0_31, %c0_32, %c0_33], %27 {strides = array<i32>} : memref<1x8x8x128xf32, #tpu.memory_space<vmem>>, vector<1x8x8x128xf32>,
    return
  }
  func.func @transform_0(%arg0: i32, %arg1: i32) -> (i32, i32, i32, i32, i32) {
    %c0_i32 = arith.constant 0 : i32
    %c0_i32_0 = arith.constant 0 : i32
    %c0_i32_1 = arith.constant 0 : i32
    %c0_i32_2 = arith.constant 0 : i32
    return %arg0, %arg1, %c0_i32, %c0_i32_0, %c0_i32_1 : i32, i32, i32, i32, i32
  }
  func.func @transform_1(%arg0: i32, %arg1: i32) -> (i32, i32, i32, i32, i32) {
    %c1_i32 = arith.constant 1 : i32
    %0 = arith.addi %arg1, %c1_i32 : i32
    %c8_i32 = arith.constant 8 : i32
    %1 = arith.muli %0, %c8_i32 : i32
    %c0_i32 = arith.constant 0 : i32
    %c0_i32_0 = arith.constant 0 : i32
    %c0_i32_1 = arith.constant 0 : i32
    %c0_i32_2 = arith.constant 0 : i32
    return %arg0, %1, %c0_i32, %c0_i32_0, %c0_i32_1 : i32, i32, i32, i32, i32
  }
  func.func @transform_2(%arg0: i32, %arg1: i32) -> (i32, i32, i32) {
    %c0_i32 = arith.constant 0 : i32
    %c0_i32_0 = arith.constant 0 : i32
    %c0_i32_1 = arith.constant 0 : i32
    %c0_i32_2 = arith.constant 0 : i32
    return %c0_i32, %c0_i32_0, %c0_i32_1 : i32, i32, i32
  }
  func.func @transform_3(%arg0: i32, %arg1: i32) -> (i32, i32) {
    %c0_i32 = arith.constant 0 : i32
    %c0_i32_0 = arith.constant 0 : i32
    %c0_i32_1 = arith.constant 0 : i32
    return %c0_i32, %c0_i32_0 : i32, i32
  }
  func.func @transform_4(%arg0: i32, %arg1: i32) -> (i32, i32, i32, i32) {
    %c0_i32 = arith.constant 0 : i32
    %c0_i32_0 = arith.constant 0 : i32
    %c0_i32_1 = arith.constant 0 : i32
    return %arg0, %arg1, %c0_i32, %c0_i32_0 : i32, i32, i32, i32
  }
}

</mosaic_0001>

<llo_original>
// kernel: tpu_custom_call.1
$region0: #{tpu_custom_call.1}
  #allocation0 [shape = 'u32[]', space=smem, size = 0x4, offset = 0x4, fixed_abs, tag = 'smem constant byte address 0x4 - core index']
  #allocation1 [shape = 'u32[144,128]{1,0:T(1,128)}', space=vmem, size = 0x12000, scoped, tag = 'internal scratch']
  %s0 = inlined_call_operand.hbm [shape: bf16[2,9,2,8,12], index: 0, kind: input, shape index: {}]
  %s1 = inlined_call_operand.hbm [shape: bf16[2,9,2,8,12], index: 1, kind: input, shape index: {}]
  %s2 = inlined_call_operand.hbm [shape: bf16[3,12,128], index: 2, kind: input, shape index: {}]
  %s3 = inlined_call_operand.vmem [shape: f32[1,128], index: 3, kind: input, shape index: {}]
  %s4 = inlined_call_operand.hbm [shape: f32[2,8,8,128], index: 4, kind: output, shape index: {}]
  %s5 = sld [smem:[#allocation0]]
  $region61: #{tpu_custom_call.1} parent=0
    _
  %s7 = ssub.s32 1, %s5
  %s8 = scalar_select 0, %s7, %s5
  $region1: #{tpu_custom_call.1} parent=0
    #allocation2 [shape = 'u8[65536]{0}', space=vmem, size = 0x10000, scoped, tag = 'input window, operand 0']
    #allocation3 [shape = 's32[2]{0}', space=sflag, size = 0x8, scoped, tag = 'scoped memory for tpu_custom_call.1']
    #allocation4 [shape = 's32[2]{0}', space=sflag, size = 0x8, scoped, tag = 'scoped memory for tpu_custom_call.1']
    #allocation5 [shape = 'u8[4096]{0}', space=vmem, size = 0x1000, scoped, tag = 'input window, operand 1']
    #allocation6 [shape = 's32[2]{0}', space=sflag, size = 0x8, scoped, tag = 'scoped memory for tpu_custom_call.1']
    #allocation7 [shape = 'u8[12288]{0}', space=vmem, size = 0x3000, scoped, tag = 'input window, operand 2, single buffered']
    #allocation8 [shape = 'u8[65536]{0}', space=vmem, size = 0x10000, scoped, tag = 'output window, operand 0']
    %9 = vsyncpa [#allocation3], 0
    %s10 = scalar_lea.sflag [#allocation3], 1
    %11 = vsyncpa %s10, 0
    %12 = vsyncpa [#allocation6], 0
    %s13 = scalar_lea.sflag [#allocation6], 1
    %14 = vsyncpa %s13, 0
    %15 = vsyncpa [#allocation4], 0
    %s16 = scalar_lea.sflag [#allocation4], 1
    %17 = vsyncpa %s16, 0
    loop: start=0, step=1, limit=4
    $region2: #{tpu_custom_call.1} parent=1 // loop_pre_header
      _
    $region3: #{tpu_custom_call.1} parent=1 // loop_header
      %s19 = sphi 0, %s23
      %p20 = scmp.ge.s32.totalorder %s19, 4
      %s26 = sphi 0, %s38
      %s27 = sphi 0, %s34
      %s28 = sphi 0, %s26
      %s29 = sphi 0, %s27
      %s30 = sphi 0, %s28
      %s31 = sphi 0, %s29
      %s43 = sphi 0, %s45
      %s46 = sphi 0, %s43
      %s47 = sphi 0, %s46
      %s63 = sphi 0, %s47
      %s75 = sphi 0, %s77
      %s78 = sphi 0, %s75
      %s79 = sphi 0, %s78
      %s95 = sphi 0, %s79
      %s99 = sphi 0, %s99
      %s101 = sphi 0, %s99
      %s102 = sphi 0, %s101
      %s116 = sphi 0, %s102
      %s120 = sphi 0, %s120
      %s122 = sphi 0, %s120
      %s123 = sphi 0, %s122
      %s137 = sphi 0, %s123
      %s145 = sphi 0, %s147
      %s148 = sphi 0, %s145
      %s149 = sphi 0, %s148
      %s165 = sphi 0, %s149
    $region4: #{tpu_custom_call.1} parent=1 // loop_header_branch
      %22 = sbr.rel (%p20) target = $region8
    $region5: #{tpu_custom_call.1} parent=1 // loop_body
      %s24 = ssub.s32 %s19, 1
      %s25 = ssub.s32 %s19, 2
      %s32 = sadd.s32 1, %s27
      %p33 = scmp.ge.s32.totalorder %s32, 1
      %s34 = scalar_select %p33, 0, %s32
      %s35 = sadd.s32 1, %s26
      %s36 = scalar_select %p33, %s35, %s26
      %p37 = scmp.ge.s32.totalorder %s36, 2
      %s38 = scalar_select %p37, 0, %s36
      %s39 = ssub.s32 %s26, %s38
      %s40 = ssub.s32 %s27, %s34
      %s41 = sor.u32 %s39, %s40
      %p42 = scmp.eq.s32.totalorder %s41, 0
      %s44 = sadd.s32 %s43, 1
      %s45 = scalar_select %p42, %s43, %s44
      %p48 = pneg %p42
      %p49 = scmp.eq.s32.totalorder %s19, 1
      %p50 = por %p48, %p49
      %p51 = scmp.ne.s32.totalorder %s43, %s46
      %p52 = scmp.eq.s32.totalorder %s19, 0
      %p53 = por %p51, %p52
      %p54 = scmp.ne.s32.totalorder %s43, %s46
      %p55 = scmp.eq.s32.totalorder %s24, 1
      %p56 = por %p54, %p55
      %p57 = scmp.ne.s32.totalorder %s46, %s47
      %p58 = scmp.eq.s32.totalorder %s24, 0
      %p59 = por %p57, %p58
      %p60 = scmp.ne.s32.totalorder %s46, %s47
      %p61 = scmp.eq.s32.totalorder %s25, 1
      %p62 = por %p60, %p61
      %p64 = scmp.ne.s32.totalorder %s47, %s63
      %p65 = scmp.eq.s32.totalorder %s25, 0
      %p66 = por %p64, %p65
      %s67 = sadd.s32 %s27, 1
      %s68 = smul.u32 %s67, 8
      %s69 = sadd.s32 %s34, 1
      %s70 = smul.u32 %s69, 8
      %s71 = ssub.s32 %s26, %s38
      %s72 = ssub.s32 %s68, %s70
      %s73 = sor.u32 %s71, %s72
      %p74 = scmp.eq.s32.totalorder %s73, 0
      %s76 = sadd.s32 %s75, 1
      %s77 = scalar_select %p74, %s75, %s76
      %p80 = pneg %p74
      %p81 = scmp.eq.s32.totalorder %s19, 1
      %p82 = por %p80, %p81
      %p83 = scmp.ne.s32.totalorder %s75, %s78
      %p84 = scmp.eq.s32.totalorder %s19, 0
      %p85 = por %p83, %p84
      %p86 = scmp.ne.s32.totalorder %s75, %s78
      %p87 = scmp.eq.s32.totalorder %s24, 1
      %p88 = por %p86, %p87
      %p89 = scmp.ne.s32.totalorder %s78, %s79
      %p90 = scmp.eq.s32.totalorder %s24, 0
      %p91 = por %p89, %p90
      %p92 = scmp.ne.s32.totalorder %s78, %s79
      %p93 = scmp.eq.s32.totalorder %s25, 1
      %p94 = por %p92, %p93
      %p96 = scmp.ne.s32.totalorder %s79, %s95
      %p97 = scmp.eq.s32.totalorder %s25, 0
      %p98 = por %p96, %p97
      %s100 = sadd.s32 %s99, 1
      %p103 = scmp.eq.s32.totalorder %s19, 1
      %p104 = scmp.ne.s32.totalorder %s99, %s101
      %p105 = scmp.eq.s32.totalorder %s19, 0
      %p106 = por %p104, %p105
      %p107 = scmp.ne.s32.totalorder %s99, %s101
      %p108 = scmp.eq.s32.totalorder %s24, 1
      %p109 = por %p107, %p108
      %p110 = scmp.ne.s32.totalorder %s101, %s102
      %p111 = scmp.eq.s32.totalorder %s24, 0
      %p112 = por %p110, %p111
      %p113 = scmp.ne.s32.totalorder %s101, %s102
      %p114 = scmp.eq.s32.totalorder %s25, 1
      %p115 = por %p113, %p114
      %p117 = scmp.ne.s32.totalorder %s102, %s116
      %p118 = scmp.eq.s32.totalorder %s25, 0
      %p119 = por %p117, %p118
      %s121 = sadd.s32 %s120, 1
      %p124 = scmp.eq.s32.totalorder %s19, 1
      %p125 = scmp.ne.s32.totalorder %s120, %s122
      %p126 = scmp.eq.s32.totalorder %s19, 0
      %p127 = por %p125, %p126
      %p128 = scmp.ne.s32.totalorder %s120, %s122
      %p129 = scmp.eq.s32.totalorder %s24, 1
      %p130 = por %p128, %p129
      %p131 = scmp.ne.s32.totalorder %s122, %s123
      %p132 = scmp.eq.s32.totalorder %s24, 0
      %p133 = por %p131, %p132
      %p134 = scmp.ne.s32.totalorder %s122, %s123
      %p135 = scmp.eq.s32.totalorder %s25, 1
      %p136 = por %p134, %p135
      %p138 = scmp.ne.s32.totalorder %s123, %s137
      %p139 = scmp.eq.s32.totalorder %s25, 0
      %p140 = por %p138, %p139
      %s141 = ssub.s32 %s26, %s38
      %s142 = ssub.s32 %s27, %s34
      %s143 = sor.u32 %s141, %s142
      %p144 = scmp.eq.s32.totalorder %s143, 0
      %s146 = sadd.s32 %s145, 1
      %s147 = scalar_select %p144, %s145, %s146
      %p150 = pneg %p144
      %p151 = scmp.eq.s32.totalorder %s19, 1
      %p152 = por %p150, %p151
      %p153 = scmp.ne.s32.totalorder %s145, %s148
      %p154 = scmp.eq.s32.totalorder %s19, 0
      %p155 = por %p153, %p154
      %p156 = scmp.ne.s32.totalorder %s145, %s148
      %p157 = scmp.eq.s32.totalorder %s24, 1
      %p158 = por %p156, %p157
      %p159 = scmp.ne.s32.totalorder %s148, %s149
      %p160 = scmp.eq.s32.totalorder %s24, 0
      %p161 = por %p159, %p160
      %p162 = scmp.ne.s32.totalorder %s148, %s149
      %p163 = scmp.eq.s32.totalorder %s25, 1
      %p164 = por %p162, %p163
      %p166 = scmp.ne.s32.totalorder %s149, %s165
      %p167 = scmp.eq.s32.totalorder %s25, 0
      %p168 = por %p166, %p167
      %p169 = scmp.le.s32.totalorder 1, %s19
      %p170 = scmp.lt.s32.totalorder %s19, 3
      %p171 = pnand %p169, %p170
      %p172 = pneg %p171
      // Predicated region
      $region9: #{tpu_custom_call.1} parent=5 // pred_check
        _
      $region10: #{tpu_custom_call.1} parent=5 // pred_check_branch
        %174 = sbr.rel (%p171) target = $region12
      $region11: #{tpu_custom_call.1} parent=5 // pred_region
        %s175 = ssub.s32 %s19, 1
        // Predicated region
        $region13: #{tpu_custom_call.1} parent=11 // pred_check
          %p176 = pneg %p112
        $region14: #{tpu_custom_call.1} parent=11 // pred_check_branch
          %178 = sbr.rel (%p176) target = $region16
        $region15: #{tpu_custom_call.1} parent=11 // pred_region
          %s180 = ssub.s32 384, 384
          %181 = vsyncadd [#allocation6], %s180
          %s182 = sshll.u32 [#allocation7], 4
          %s183 = int_to_ptr.vmem [resolvable:$true] %s182
          %188 = dma.hbm_to_vmem [thread:$0]  %s2, 384, %s183, [#allocation6], 64, 64, 4
        $region16: #{tpu_custom_call.1} parent=11 // pred_fallthru
          _
        // Predicated region
        $region17: #{tpu_custom_call.1} parent=11 // pred_check
          %p189 = pneg %p133
        $region18: #{tpu_custom_call.1} parent=11 // pred_check_branch
          %191 = sbr.rel (%p189) target = $region20
        $region19: #{tpu_custom_call.1} parent=11 // pred_region
          _
        $region20: #{tpu_custom_call.1} parent=11 // pred_fallthru
          _
      $region12: #{tpu_custom_call.1} parent=5 // pred_fallthru
        _
      %p192 = scmp.lt.s32.totalorder %s19, 2
      // Predicated region
      $region21: #{tpu_custom_call.1} parent=5 // pred_check
        %p193 = pneg %p192
      $region22: #{tpu_custom_call.1} parent=5 // pred_check_branch
        %195 = sbr.rel (%p193) target = $region24
      $region23: #{tpu_custom_call.1} parent=5 // pred_region
        // Predicated region
        $region25: #{tpu_custom_call.1} parent=23 // pred_check
          %p196 = pneg %p53
        $region26: #{tpu_custom_call.1} parent=23 // pred_check_branch
          %198 = sbr.rel (%p196) target = $region28
        $region27: #{tpu_custom_call.1} parent=23 // pred_region
          %s199 = sand.u32 %s43, 1
          %s200 = scalar_lea.sflag [#allocation3], %s199
          %s201 = sand.u32 %s43, 1
          %s202 = smul.addr %s201, 64
          %s203 = scalar_lea.vmem [#allocation2], %s202
          %s204 = smul.u32 8, %s27
          %s205 = ssub.s32 9, %s204
          %p206 = scmp.lt.s32.totalorder %s205, 8
          %s207 = scalar_select %p206, %s205, 8
          %s208 = smul.u32 64, %s207
          %s209 = smul.u32 %s208, 2
          %s211 = ssub.s32 1024, %s209
          %212 = vsyncadd %s200, %s211
          %p213 = scmp.ne.s32.totalorder 0, %s209
          %s214 = smul.addr %s204, 2
          %s215 = smul.addr %s26, 18
          %s216 = sadd.s32 %s214, %s215
          %s217 = smul.addr %s216, 64
          %s218 = scalar_lea.hbm %s0, %s217
          %s219 = smul.u32 %s207, 2
          %s220 = smul.u32 4, %s219
          %s221 = sshll.u32 %s203, 4
          %s222 = int_to_ptr.vmem [resolvable:$true] %s221
          %s223 = sshll.u32 %s220, 4
          %227 = dma.hbm_to_vmem [thread:$0]  (%p213), %s218, %s223, %s222, %s200, 64, 64, 4
        $region28: #{tpu_custom_call.1} parent=23 // pred_fallthru
          _
        // Predicated region
        $region29: #{tpu_custom_call.1} parent=23 // pred_check
          %p228 = pneg %p85
        $region30: #{tpu_custom_call.1} parent=23 // pred_check_branch
          %230 = sbr.rel (%p228) target = $region32
        $region31: #{tpu_custom_call.1} parent=23 // pred_region
          %s231 = sand.u32 %s19, 1
          %s232 = scalar_lea.sflag [#allocation6], %s231
          %s233 = sand.u32 %s75, 1
          %s234 = smul.addr %s233, 4
          %s235 = scalar_lea.vmem [#allocation5], %s234
          %s236 = sadd.s32 %s27, 1
          %s237 = smul.u32 %s236, 8
          %s239 = ssub.s32 64, 64
          %240 = vsyncadd %s232, %s239
          %s241 = smul.addr %s237, 2
          %s242 = smul.addr %s26, 18
          %s243 = sadd.s32 %s241, %s242
          %s244 = smul.addr %s243, 64
          %s245 = scalar_lea.hbm %s1, %s244
          %s247 = sshll.u32 %s235, 4
          %s248 = int_to_ptr.vmem [resolvable:$true] %s247
          %250 = dma.hbm_to_vmem [thread:$0]  %s245, 64, %s248, %s232
        $region32: #{tpu_custom_call.1} parent=23 // pred_fallthru
          _
      $region24: #{tpu_custom_call.1} parent=5 // pred_fallthru
        _
      %p251 = scmp.le.s32.totalorder 1, %s19
      %p252 = scmp.lt.s32.totalorder %s19, 3
      %p253 = pnand %p251, %p252
      %p254 = pneg %p253
      // Predicated region
      $region33: #{tpu_custom_call.1} parent=5 // pred_check
        _
      $region34: #{tpu_custom_call.1} parent=5 // pred_check_branch
        %256 = sbr.rel (%p253) target = $region36
      $region35: #{tpu_custom_call.1} parent=5 // pred_region
        %s257 = ssub.s32 %s19, 1
        %s258 = sand.u32 %s46, 1
        %s259 = scalar_lea.sflag [#allocation3], %s258
        %s260 = sand.u32 %s46, 1
        %s261 = smul.addr %s260, 64
        %s262 = scalar_lea.vmem [#allocation2], %s261
        // Predicated region
        $region37: #{tpu_custom_call.1} parent=35 // pred_check
          %p263 = pneg %p59
        $region38: #{tpu_custom_call.1} parent=35 // pred_check_branch
          %265 = sbr.rel (%p263) target = $region40
        $region39: #{tpu_custom_call.1} parent=35 // pred_region
          %266 = dma.done %s259, 1024
        $region40: #{tpu_custom_call.1} parent=35 // pred_fallthru
          _
        %s267 = sand.u32 %s24, 1
        %s268 = scalar_lea.sflag [#allocation6], %s267
        %s269 = sand.u32 %s78, 1
        %s270 = smul.addr %s269, 4
        %s271 = scalar_lea.vmem [#allocation5], %s270
        // Predicated region
        $region41: #{tpu_custom_call.1} parent=35 // pred_check
          %p272 = pneg %p91
        $region42: #{tpu_custom_call.1} parent=35 // pred_check_branch
          %274 = sbr.rel (%p272) target = $region44
        $region43: #{tpu_custom_call.1} parent=35 // pred_region
          %275 = dma.done %s268, 64
        $region44: #{tpu_custom_call.1} parent=35 // pred_fallthru
          _
        // Predicated region
        $region45: #{tpu_custom_call.1} parent=35 // pred_check
          %p276 = pneg %p112
        $region46: #{tpu_custom_call.1} parent=35 // pred_check_branch
          %278 = sbr.rel (%p276) target = $region48
        $region47: #{tpu_custom_call.1} parent=35 // pred_region
          %279 = dma.done [#allocation6], 384
        $region48: #{tpu_custom_call.1} parent=35 // pred_fallthru
          _
        %s280 = sand.u32 %s46, 1
        %s281 = scalar_lea.sflag [#allocation3], %s280
        %s282 = sand.u32 %s46, 1
        %s283 = smul.addr %s282, 64
        %s284 = scalar_lea.vmem [#allocation2], %s283
        %p285 = pneg %p59
        %p286 = pneg %p56
        %s287 = sand.u32 %s24, 1
        %s288 = scalar_lea.sflag [#allocation6], %s287
        %s289 = sand.u32 %s78, 1
        %s290 = smul.addr %s289, 4
        %s291 = scalar_lea.vmem [#allocation5], %s290
        %p292 = pneg %p91
        %p293 = pneg %p88
        %p294 = pneg %p112
        %p295 = pneg %p109
        %p296 = pneg %p133
        %p297 = pneg %p130
        %p298 = pneg %p161
        %p299 = pneg %p158
        %s300 = sand.u32 %s148, 1
        %s301 = scalar_lea.sflag [#allocation4], %s300
        %s302 = sand.u32 %s148, 1
        %s303 = smul.addr %s302, 64
        %s304 = scalar_lea.vmem [#allocation8], %s303
        %s305 = smul.u32 8, %s29
        %s306 = ssub.s32 9, %s305
        %p307 = scmp.lt.s32.totalorder %s306, 8
        %s308 = scalar_select %p307, %s306, 8
        %s309 = smul.u32 64, %s308
        %s310 = smul.u32 %s309, 2
        %s311 = sadd.s32 %s29, 1
        %s312 = smul.u32 %s311, 8
        %s313 = smul.u32 8, %s29
        %v315 = vld [vmem:[%s262] sm:$0xf]
        %v316 = vld [vmem:[%s262 + $0x8] sm:$0xf]
        %v317 = vld [vmem:[%s262 + $0x10] sm:$0xf]
        %v318 = vld [vmem:[%s262 + $0x18] sm:$0xf]
        %v319 = vld [vmem:[%s262 + $0x20] sm:$0xf]
        %v320 = vld [vmem:[%s262 + $0x28] sm:$0xf]
        %v321 = vld [vmem:[%s262 + $0x30] sm:$0xf]
        %v322 = vld [vmem:[%s262 + $0x38] sm:$0xf]
        %s323 = scalar_lea.vmem %s262, 4 [#allocation2]
        %v324 = vld [vmem:[%s323] sm:$0xf]
        %v325 = vld [vmem:[%s323 + $0x8] sm:$0xf]
        %v326 = vld [vmem:[%s323 + $0x10] sm:$0xf]
        %v327 = vld [vmem:[%s323 + $0x18] sm:$0xf]
        %v328 = vld [vmem:[%s323 + $0x20] sm:$0xf]
        %v329 = vld [vmem:[%s323 + $0x28] sm:$0xf]
        %v330 = vld [vmem:[%s323 + $0x30] sm:$0xf]
        %v331 = vld [vmem:[%s323 + $0x38] sm:$0xf]
        %v332 = vld [vmem:[%s271] sm:$0xf]
        %s333 = scalar_lea.vmem %s262, 8 [#allocation2]
        %v334 = vld [vmem:[%s333] sm:$0xf]
        %v335 = vld [vmem:[%s333 + $0x8] sm:$0xf]
        %v336 = vld [vmem:[%s333 + $0x10] sm:$0xf]
        %v337 = vld [vmem:[%s333 + $0x18] sm:$0xf]
        %v338 = vld [vmem:[%s333 + $0x20] sm:$0xf]
        %v339 = vld [vmem:[%s333 + $0x28] sm:$0xf]
        %v340 = vld [vmem:[%s333 + $0x30] sm:$0xf]
        %v341 = vld [vmem:[%s3] sm:$0x1]
        %v343 = vlaneseq
        %v344 = vshrl.u32 %v343, 7
        %v345 = vsub.s32 0, %v344
        %v346 = vrot.slane %v341, %v345
        %v348 = vld [vmem:[#allocation7] sm:$0xf]
        %v349 = vld [vmem:[#allocation7 + $0x4] sm:$0x3]
        %v358 = vunpack.c.l.b16 %v315
        %v359 = vunpack.c.l.b16 %v316
        %v360 = vunpack.c.l.b16 %v317
        %v361 = vunpack.c.l.b16 %v318
        %v362 = vunpack.c.l.b16 %v319
        %v363 = vunpack.c.l.b16 %v320
        %v364 = vunpack.c.l.b16 %v321
        %v365 = vunpack.c.l.b16 %v322
        %v366 = vpack.c.b16 %v359, %v358
        %v367 = vpack.c.b16 %v361, %v360
        %v368 = vpack.c.b16 %v363, %v362
        %v369 = vpack.c.b16 %v365, %v364
        %v372 = vunpack.c.l.b16 %v348
        %v373 = vunpack.c.l.b16 %v349
        %v374 = vpack.c.b16 %v373, %v372
        %vm375 = vcmask 97280
        %v377 = vsel %vm375, %v366, 0
        %v380 = vsel %vm375, %v367, 0
        %v383 = vsel %vm375, %v368, 0
        %v386 = vsel %vm375, %v369, 0
        %vm388 = vcmask 1045504
        %v390 = vsel %vm388, %v374, 0
        %392 = vmatprep.subr.bf16.mxu0 0
        %393 = vmatpush1.bf16.msra.mxu0 %v390
        %394 = vmatprep.subr.bf16.mxu0 0
        %395 = vmatpush1.bf16.msra.mxu0 0
        %396 = vmatprep.subr.bf16.mxu0 0
        %397 = vmatpush1.bf16.msra.mxu0 0
        %398 = vmatprep.subr.bf16.mxu0 0
        %399 = vmatpush1.bf16.msra.mxu0 0
        %400 = vmatprep.subr.bf16.mxu0 0
        %401 = vmatpush1.bf16.msra.mxu0 0
        %402 = vmatprep.subr.bf16.mxu0 0
        %403 = vmatpush1.bf16.msra.mxu0 0
        %404 = vmatprep.subr.bf16.mxu0 0
        %405 = vmatpush1.bf16.msra.mxu0 0
        %406 = vmatprep.subr.bf16.mxu0 0
        %407 = vmatpush1.bf16.msra.mxu0 0
        %408 = vmatprep.subr.bf16.mxu0 0
        %409 = vmatpush1.bf16.msra.mxu0 0
        %410 = vmatprep.subr.bf16.mxu0 0
        %411 = vmatpush1.bf16.msra.mxu0 0
        %412 = vmatprep.subr.bf16.mxu0 0
        %413 = vmatpush1.bf16.msra.mxu0 0
        %414 = vmatprep.subr.bf16.mxu0 0
        %415 = vmatpush1.bf16.msra.mxu0 0
        %416 = vmatprep.subr.bf16.mxu0 0
        %417 = vmatpush1.bf16.msra.mxu0 0
        %418 = vmatprep.subr.bf16.mxu0 0
        %419 = vmatpush1.bf16.msra.mxu0 0
        %420 = vmatprep.subr.bf16.mxu0 0
        %421 = vmatpush1.bf16.msra.mxu0 0
        %422 = vmatprep.subr.bf16.mxu0 0
        %423 = vmatpush1.bf16.msra.mxu0 0
        %424 = vmatprep.mubr.bf16.mxu0 0
        %425 = vmatmul.mubr.bf16.gmra.mrb[0].mxu0 %v377
        %v426 = vpop.f32.mrb[0].mxu0
        %v427 = vadd.f32 0.0, %v426
        %v428 = vpop.f32.mrb[0].mxu0
        %v429 = vpop.f32.mrb[0].mxu0
        %v430 = vadd.f32 0.0, %v429
        %v431 = vpop.f32.mrb[0].mxu0
        %432 = vmatprep.mubr.bf16.mxu0 0
        %433 = vmatmul.mubr.bf16.gmra.mrb[0].mxu0 %v380
        %v434 = vpop.f32.mrb[0].mxu0
        %v435 = vadd.f32 0.0, %v434
        %v436 = vpop.f32.mrb[0].mxu0
        %v437 = vpop.f32.mrb[0].mxu0
        %v438 = vadd.f32 0.0, %v437
        %v439 = vpop.f32.mrb[0].mxu0
        %440 = vmatprep.mubr.bf16.mxu0 0
        %441 = vmatmul.mubr.bf16.gmra.mrb[0].mxu0 %v383
        %v442 = vpop.f32.mrb[0].mxu0
        %v443 = vadd.f32 0.0, %v442
        %v444 = vpop.f32.mrb[0].mxu0
        %v445 = vpop.f32.mrb[0].mxu0
        %v446 = vadd.f32 0.0, %v445
        %v447 = vpop.f32.mrb[0].mxu0
        %448 = vmatprep.mubr.bf16.mxu0 0
        %449 = vmatmul.mubr.bf16.gmra.mrb[0].mxu0 %v386
        %v450 = vpop.f32.mrb[0].mxu0
        %v451 = vadd.f32 0.0, %v450
        %v452 = vpop.f32.mrb[0].mxu0
        %v453 = vpop.f32.mrb[0].mxu0
        %v454 = vadd.f32 0.0, %v453
        %v455 = vpop.f32.mrb[0].mxu0
        %456 = vdwg.mxu0
        %v457 = vadd.f32 %v346, %v427
        %v458 = vadd.f32 %v346, %v430
        %v459 = vadd.f32 %v346, %v435
        %v460 = vadd.f32 %v346, %v438
        %v461 = vadd.f32 %v346, %v443
        %v462 = vadd.f32 %v346, %v446
        %v463 = vadd.f32 %v346, %v451
        %v464 = vadd.f32 %v346, %v454
        %s465 = scalar_lea.vmem [#allocation7], 8
        %v466 = vld [vmem:[%s465] sm:$0xf]
        %v467 = vld [vmem:[%s465 + $0x4] sm:$0x3]
        %v476 = vunpack.c.l.b16 %v324
        %v477 = vunpack.c.l.b16 %v325
        %v478 = vunpack.c.l.b16 %v326
        %v479 = vunpack.c.l.b16 %v327
        %v480 = vunpack.c.l.b16 %v328
        %v481 = vunpack.c.l.b16 %v329
        %v482 = vunpack.c.l.b16 %v330
        %v483 = vunpack.c.l.b16 %v331
        %v484 = vpack.c.b16 %v477, %v476
        %v485 = vpack.c.b16 %v479, %v478
        %v486 = vpack.c.b16 %v481, %v480
        %v487 = vpack.c.b16 %v483, %v482
        %v490 = vunpack.c.l.b16 %v466
        %v491 = vunpack.c.l.b16 %v467
        %v492 = vpack.c.b16 %v491, %v490
        %v494 = vsel %vm375, %v484, 0
        %v497 = vsel %vm375, %v485, 0
        %v500 = vsel %vm375, %v486, 0
        %v503 = vsel %vm375, %v487, 0
        %v506 = vsel %vm388, %v492, 0
        %508 = vmatprep.subr.bf16.mxu0 0
        %509 = vmatpush1.bf16.msra.mxu0 %v506
        %510 = vmatprep.subr.bf16.mxu0 0
        %511 = vmatpush1.bf16.msra.mxu0 0
        %512 = vmatprep.subr.bf16.mxu0 0
        %513 = vmatpush1.bf16.msra.mxu0 0
        %514 = vmatprep.subr.bf16.mxu0 0
        %515 = vmatpush1.bf16.msra.mxu0 0
        %516 = vmatprep.subr.bf16.mxu0 0
        %517 = vmatpush1.bf16.msra.mxu0 0
        %518 = vmatprep.subr.bf16.mxu0 0
        %519 = vmatpush1.bf16.msra.mxu0 0
        %520 = vmatprep.subr.bf16.mxu0 0
        %521 = vmatpush1.bf16.msra.mxu0 0
        %522 = vmatprep.subr.bf16.mxu0 0
        %523 = vmatpush1.bf16.msra.mxu0 0
        %524 = vmatprep.subr.bf16.mxu0 0
        %525 = vmatpush1.bf16.msra.mxu0 0
        %526 = vmatprep.subr.bf16.mxu0 0
        %527 = vmatpush1.bf16.msra.mxu0 0
        %528 = vmatprep.subr.bf16.mxu0 0
        %529 = vmatpush1.bf16.msra.mxu0 0
        %530 = vmatprep.subr.bf16.mxu0 0
        %531 = vmatpush1.bf16.msra.mxu0 0
        %532 = vmatprep.subr.bf16.mxu0 0
        %533 = vmatpush1.bf16.msra.mxu0 0
        %534 = vmatprep.subr.bf16.mxu0 0
        %535 = vmatpush1.bf16.msra.mxu0 0
        %536 = vmatprep.subr.bf16.mxu0 0
        %537 = vmatpush1.bf16.msra.mxu0 0
        %538 = vmatprep.subr.bf16.mxu0 0
        %539 = vmatpush1.bf16.msra.mxu0 0
        %540 = vmatprep.mubr.bf16.mxu0 0
        %541 = vmatmul.mubr.bf16.gmra.mrb[0].mxu0 %v494
        %v542 = vpop.f32.mrb[0].mxu0
        %v543 = vadd.f32 0.0, %v542
        %v544 = vpop.f32.mrb[0].mxu0
        %v545 = vpop.f32.mrb[0].mxu0
        %v546 = vadd.f32 0.0, %v545
        %v547 = vpop.f32.mrb[0].mxu0
        %548 = vmatprep.mubr.bf16.mxu0 0
        %549 = vmatmul.mubr.bf16.gmra.mrb[0].mxu0 %v497
        %v550 = vpop.f32.mrb[0].mxu0
        %v551 = vadd.f32 0.0, %v550
        %v552 = vpop.f32.mrb[0].mxu0
        %v553 = vpop.f32.mrb[0].mxu0
        %v554 = vadd.f32 0.0, %v553
        %v555 = vpop.f32.mrb[0].mxu0
        %556 = vmatprep.mubr.bf16.mxu0 0
        %557 = vmatmul.mubr.bf16.gmra.mrb[0].mxu0 %v500
        %v558 = vpop.f32.mrb[0].mxu0
        %v559 = vadd.f32 0.0, %v558
        %v560 = vpop.f32.mrb[0].mxu0
        %v561 = vpop.f32.mrb[0].mxu0
        %v562 = vadd.f32 0.0, %v561
        %v563 = vpop.f32.mrb[0].mxu0
        %564 = vmatprep.mubr.bf16.mxu0 0
        %565 = vmatmul.mubr.bf16.gmra.mrb[0].mxu0 %v503
        %v566 = vpop.f32.mrb[0].mxu0
        %v567 = vadd.f32 0.0, %v566
        %v568 = vpop.f32.mrb[0].mxu0
        %v569 = vpop.f32.mrb[0].mxu0
        %v570 = vadd.f32 0.0, %v569
        %v571 = vpop.f32.mrb[0].mxu0
        %572 = vdwg.mxu0
        %v573 = vadd.f32 %v457, %v543
        %v574 = vadd.f32 %v458, %v546
        %v575 = vadd.f32 %v459, %v551
        %v576 = vadd.f32 %v460, %v554
        %v577 = vadd.f32 %v461, %v559
        %v578 = vadd.f32 %v462, %v562
        %v579 = vadd.f32 %v463, %v567
        %v580 = vadd.f32 %v464, %v570
        %s581 = scalar_lea.vmem [#allocation7], 16
        %v582 = vld [vmem:[%s581] sm:$0xf]
        %v583 = vld [vmem:[%s581 + $0x4] sm:$0x3]
        %v592 = vunpack.c.l.b16 %v334
        %v593 = vunpack.c.l.b16 %v335
        %v594 = vunpack.c.l.b16 %v336
        %v595 = vunpack.c.l.b16 %v337
        %v596 = vunpack.c.l.b16 %v338
        %v597 = vunpack.c.l.b16 %v339
        %v598 = vunpack.c.l.b16 %v340
        %v599 = vunpack.c.l.b16 %v332
        %v600 = vpack.c.b16 %v593, %v592
        %v601 = vpack.c.b16 %v595, %v594
        %v602 = vpack.c.b16 %v597, %v596
        %v603 = vpack.c.b16 %v599, %v598
        %v606 = vunpack.c.l.b16 %v582
        %v607 = vunpack.c.l.b16 %v583
        %v608 = vpack.c.b16 %v607, %v606
        %v610 = vsel %vm375, %v600, 0
        %v613 = vsel %vm375, %v601, 0
        %v616 = vsel %vm375, %v602, 0
        %v619 = vsel %vm375, %v603, 0
        %v622 = vsel %vm388, %v608, 0
        %624 = vmatprep.subr.bf16.mxu0 0
        %625 = vmatpush1.bf16.msra.mxu0 %v622
        %626 = vmatprep.subr.bf16.mxu0 0
        %627 = vmatpush1.bf16.msra.mxu0 0
        %628 = vmatprep.subr.bf16.mxu0 0
        %629 = vmatpush1.bf16.msra.mxu0 0
        %630 = vmatprep.subr.bf16.mxu0 0
        %631 = vmatpush1.bf16.msra.mxu0 0
        %632 = vmatprep.subr.bf16.mxu0 0
        %633 = vmatpush1.bf16.msra.mxu0 0
        %634 = vmatprep.subr.bf16.mxu0 0
        %635 = vmatpush1.bf16.msra.mxu0 0
        %636 = vmatprep.subr.bf16.mxu0 0
        %637 = vmatpush1.bf16.msra.mxu0 0
        %638 = vmatprep.subr.bf16.mxu0 0
        %639 = vmatpush1.bf16.msra.mxu0 0
        %640 = vmatprep.subr.bf16.mxu0 0
        %641 = vmatpush1.bf16.msra.mxu0 0
        %642 = vmatprep.subr.bf16.mxu0 0
        %643 = vmatpush1.bf16.msra.mxu0 0
        %644 = vmatprep.subr.bf16.mxu0 0
        %645 = vmatpush1.bf16.msra.mxu0 0
        %646 = vmatprep.subr.bf16.mxu0 0
        %647 = vmatpush1.bf16.msra.mxu0 0
        %648 = vmatprep.subr.bf16.mxu0 0
        %649 = vmatpush1.bf16.msra.mxu0 0
        %650 = vmatprep.subr.bf16.mxu0 0
        %651 = vmatpush1.bf16.msra.mxu0 0
        %652 = vmatprep.subr.bf16.mxu0 0
        %653 = vmatpush1.bf16.msra.mxu0 0
        %654 = vmatprep.subr.bf16.mxu0 0
        %655 = vmatpush1.bf16.msra.mxu0 0
        %656 = vmatprep.mubr.bf16.mxu0 0
        %657 = vmatmul.mubr.bf16.gmra.mrb[0].mxu0 %v610
        %v658 = vpop.f32.mrb[0].mxu0
        %v659 = vadd.f32 0.0, %v658
        %v660 = vpop.f32.mrb[0].mxu0
        %v661 = vpop.f32.mrb[0].mxu0
        %v662 = vadd.f32 0.0, %v661
        %v663 = vpop.f32.mrb[0].mxu0
        %664 = vmatprep.mubr.bf16.mxu0 0
        %665 = vmatmul.mubr.bf16.gmra.mrb[0].mxu0 %v613
        %v666 = vpop.f32.mrb[0].mxu0
        %v667 = vadd.f32 0.0, %v666
        %v668 = vpop.f32.mrb[0].mxu0
        %v669 = vpop.f32.mrb[0].mxu0
        %v670 = vadd.f32 0.0, %v669
        %v671 = vpop.f32.mrb[0].mxu0
        %672 = vmatprep.mubr.bf16.mxu0 0
        %673 = vmatmul.mubr.bf16.gmra.mrb[0].mxu0 %v616
        %v674 = vpop.f32.mrb[0].mxu0
        %v675 = vadd.f32 0.0, %v674
        %v676 = vpop.f32.mrb[0].mxu0
        %v677 = vpop.f32.mrb[0].mxu0
        %v678 = vadd.f32 0.0, %v677
        %v679 = vpop.f32.mrb[0].mxu0
        %680 = vmatprep.mubr.bf16.mxu0 0
        %681 = vmatmul.mubr.bf16.gmra.mrb[0].mxu0 %v619
        %v682 = vpop.f32.mrb[0].mxu0
        %v683 = vadd.f32 0.0, %v682
        %v684 = vpop.f32.mrb[0].mxu0
        %v685 = vpop.f32.mrb[0].mxu0
        %v686 = vadd.f32 0.0, %v685
        %v687 = vpop.f32.mrb[0].mxu0
        %688 = vdwg.mxu0
        %v689 = vadd.f32 %v573, %v659
        %v690 = vadd.f32 %v574, %v662
        %v691 = vadd.f32 %v575, %v667
        %v692 = vadd.f32 %v576, %v670
        %v693 = vadd.f32 %v577, %v675
        %v694 = vadd.f32 %v578, %v678
        %v695 = vadd.f32 %v579, %v683
        %v696 = vadd.f32 %v580, %v686
        %697 = vst [vmem:[%s304] sm:$0xff] %v689
        %698 = vst [vmem:[%s304 + $0x8] sm:$0xff] %v690
        %699 = vst [vmem:[%s304 + $0x10] sm:$0xff] %v691
        %700 = vst [vmem:[%s304 + $0x18] sm:$0xff] %v692
        %701 = vst [vmem:[%s304 + $0x20] sm:$0xff] %v693
        %702 = vst [vmem:[%s304 + $0x28] sm:$0xff] %v694
        %703 = vst [vmem:[%s304 + $0x30] sm:$0xff] %v695
        %704 = vst [vmem:[%s304 + $0x38] sm:$0xff] %v696
        %s705 = sand.u32 %s148, 1
        %s706 = scalar_lea.sflag [#allocation4], %s705
        %s707 = sand.u32 %s148, 1
        %s708 = smul.addr %s707, 64
        %s709 = scalar_lea.vmem [#allocation8], %s708
        // Predicated region
        $region49: #{tpu_custom_call.1} parent=35 // pred_check
          %p710 = pneg %p158
        $region50: #{tpu_custom_call.1} parent=35 // pred_check_branch
          %712 = sbr.rel (%p710) target = $region52
        $region51: #{tpu_custom_call.1} parent=35 // pred_region
          %s713 = smul.u32 8, %s29
          %s715 = ssub.s32 1024, 1024
          %716 = vsyncadd %s706, %s715
          %s717 = smul.addr %s28, 8
          %s718 = sadd.s32 %s713, %s717
          %s719 = smul.addr %s718, 128
          %s720 = scalar_lea.hbm %s4, %s719
          %s721 = sshll.u32 %s709, 4
          %s722 = int_to_ptr.vmem [resolvable:$true] %s721
          %727 = dma.vmem_to_hbm [thread:$0]  %s722, 1024, %s720, %s706, 128, 128, 8
        $region52: #{tpu_custom_call.1} parent=35 // pred_fallthru
          _
      $region36: #{tpu_custom_call.1} parent=5 // pred_fallthru
        _
      %p728 = scmp.le.s32.totalorder 2, %s19
      // Predicated region
      $region53: #{tpu_custom_call.1} parent=5 // pred_check
        %p729 = pneg %p728
      $region54: #{tpu_custom_call.1} parent=5 // pred_check_branch
        %731 = sbr.rel (%p729) target = $region56
      $region55: #{tpu_custom_call.1} parent=5 // pred_region
        %s732 = ssub.s32 %s19, 2
        // Predicated region
        $region57: #{tpu_custom_call.1} parent=55 // pred_check
          %p733 = pneg %p164
        $region58: #{tpu_custom_call.1} parent=55 // pred_check_branch
          %735 = sbr.rel (%p733) target = $region60
        $region59: #{tpu_custom_call.1} parent=55 // pred_region
          %s736 = sand.u32 %s149, 1
          %s737 = scalar_lea.sflag [#allocation4], %s736
          %s738 = sand.u32 %s149, 1
          %s739 = smul.addr %s738, 64
          %s740 = scalar_lea.vmem [#allocation8], %s739
          %741 = dma.done %s737, 1024
        $region60: #{tpu_custom_call.1} parent=55 // pred_fallthru
          _
      $region56: #{tpu_custom_call.1} parent=5 // pred_fallthru
        _
    $region6: #{tpu_custom_call.1} parent=1 // loop_footer
      %s23 = sadd.s32 1, %s19
    $region7: #{tpu_custom_call.1} parent=1 // loop_footer_branch
      %18 = sbr.rel target = $region3
    $region8: #{tpu_custom_call.1} parent=1 // loop_exit
      _
    %742 = vsyncpa [#allocation3], 1
    %s743 = scalar_lea.sflag [#allocation3], 1
    %744 = vsyncpa %s743, 1
    %745 = vsyncpa [#allocation6], 1
    %s746 = scalar_lea.sflag [#allocation6], 1
    %747 = vsyncpa %s746, 1
    %748 = vsyncpa [#allocation4], 1
    %s749 = scalar_lea.sflag [#allocation4], 1
    %750 = vsyncpa %s749, 1

</llo_original>
